<compile_context>
chip_gen: v6e
topology: v6e:2x2x1
jax: 0.10.0
libtpu: 0.0.40
codegen_flags: <defaults>
</compile_context>

<pallas_src>
import jax
import jax.numpy as jnp
from jax.experimental import pallas as pl
from jax.experimental.pallas import tpu as pltpu

CODE_SIZE = 100
ACTION_SIZE = 4
INPUT_SIZE = CODE_SIZE + ACTION_SIZE      # 104
HIDDEN_SIZE = INPUT_SIZE * 2              # 208
HIDDEN_PAD = 256                          # lane-aligned hidden width (zero-padded)
A_PAD = 8                                 # action lanes: [a0..a3, 1 (carries b1), 0, 0, 0]
TB_MAX = 1024                             # max batch rows per grid step


def _transition_delta_kernel(z_ref, a_ref, w1z_ref, w1a_ref, w2_ref, out_ref):
    """One batch tile: fused concat-matmul + sigmoid + matmul + tanh + residual clamp.

    Bias handling: b1 lives in w1a_ref row ACTION_SIZE (multiplied by the constant-1
    lane of a_ref); b2 lives in w2_ref row HIDDEN_SIZE as 2*b2 (multiplied by the
    padded hidden lanes whose value is exactly sigmoid(0) = 0.5).
    """
    z = z_ref[...]                                                      # (TB, 100) f32

    # layer1 pre-activation, both terms on the MXU (bf16 operands, f32 accumulation):
    #   z @ W1[:100]              (K = 100)
    #   [action, 1] @ W1[100:]    (K = 8, carries b1)
    h = jnp.dot(z.astype(jnp.bfloat16), w1z_ref[...],
                preferred_element_type=jnp.float32)
    h = h + jnp.dot(a_ref[...], w1a_ref[...],
                    preferred_element_type=jnp.float32)                 # (TB, 256) f32

    # sigmoid(x) = 0.5*tanh(0.5*x) + 0.5  -- single EUP transcendental, f32 math.
    h = 0.5 * jnp.tanh(0.5 * h) + 0.5
    # Padded hidden lanes (208:256) have pre-activation exactly 0 -> value exactly 0.5,
    # which W2's padded rows turn into the b2 bias (row 208 = 2*b2, rows 209:255 = 0).

    d = jnp.tanh(jnp.dot(h.astype(jnp.bfloat16), w2_ref[...],
                         preferred_element_type=jnp.float32))           # (TB, 100) f32

    z_prime = z + d
    # where-form clamp (keeps PyTorch's NaN -> 1.0 behaviour; do not switch to clip)
    z_prime = jnp.where(z_prime < 1.0, z_prime, jnp.float32(1.0))
    z_prime = jnp.where(z_prime >= 0.0, z_prime, jnp.float32(0.0))
    out_ref[...] = z_prime


def prepare_params(params):
    """One-time weight prep:
      * split W1 into its z part (100 rows) and action part (4 rows),
      * zero-pad hidden 208 -> 256 and cast all MXU operands to bf16,
      * fold b1 into the action operand's constant-1 row,
      * fold b2 into W2's first padded row as 2*b2 (pairs with sigmoid(0) = 0.5 lanes).
    """
    w1, b1, w2, b2 = params               # (104,208), (208,), (208,100), (100,)

    w1z = jnp.zeros((CODE_SIZE, HIDDEN_PAD), jnp.bfloat16)
    w1z = w1z.at[:, :HIDDEN_SIZE].set(w1[:CODE_SIZE].astype(jnp.bfloat16))

    w1a = jnp.zeros((A_PAD, HIDDEN_PAD), jnp.bfloat16)
    w1a = w1a.at[:ACTION_SIZE, :HIDDEN_SIZE].set(w1[CODE_SIZE:].astype(jnp.bfloat16))
    w1a = w1a.at[ACTION_SIZE, :HIDDEN_SIZE].set(b1.astype(jnp.bfloat16))

    w2p = jnp.zeros((HIDDEN_PAD, CODE_SIZE), jnp.bfloat16)
    w2p = w2p.at[:HIDDEN_SIZE, :].set(w2.astype(jnp.bfloat16))
    w2p = w2p.at[HIDDEN_SIZE, :].set((2.0 * b2).astype(jnp.bfloat16))
    return (w1z, w1a, w2p)


def _augment_action(action):
    """(B, 4) any numeric dtype -> (B, 8) bf16: [a0..a3, 1, 0, 0, 0] (the 1 carries b1)."""
    B = action.shape[0]
    a_aug = jnp.zeros((B, A_PAD), jnp.bfloat16)
    a_aug = a_aug.at[:, :ACTION_SIZE].set(action.astype(jnp.bfloat16))
    a_aug = a_aug.at[:, ACTION_SIZE].set(1.0)
    return a_aug


def _choose_tb(B, tb_max):
    """Rows per grid step: >=2 steps whenever B > 8 (v7x megacore sharding),
    8-row-aligned blocks, capped at tb_max."""
    if B <= 8:
        return B                                  # single block == full batch dim (legal)
    tb = ((pl.cdiv(B, 2) + 7) // 8) * 8           # ~half the batch, rounded up to 8
    return max(8, min(tb, tb_max))


def transition_delta_forward(z, action, prepared_params, *, tb_max=TB_MAX):
    """z: (B, 100) float, action: (B, 4) any numeric dtype. Returns (B, 100) f32."""
    w1z, w1a, w2p = prepared_params
    z = z.astype(jnp.float32)
    B = z.shape[0]
    a_aug = _augment_action(action)

    tb = _choose_tb(B, tb_max)
    grid = (pl.cdiv(B, tb),)                      # partial last block if tb doesn't divide B

    row = lambda feat: pl.BlockSpec((tb, feat), lambda i: (i, 0))   # batch-tiled
    resident = lambda shp: pl.BlockSpec(shp, lambda i: (0, 0))      # VMEM-resident weights

    return pl.pallas_call(
        _transition_delta_kernel,
        out_shape=jax.ShapeDtypeStruct((B, CODE_SIZE), jnp.float32),
        grid=grid,
        in_specs=[
            row(CODE_SIZE),                        # z            (f32)
            row(A_PAD),                            # [action, 1]  (bf16)
            resident((CODE_SIZE, HIDDEN_PAD)),     # W1_z         (bf16)
            resident((A_PAD, HIDDEN_PAD)),         # W1_a (+ b1)  (bf16)
            resident((HIDDEN_PAD, CODE_SIZE)),     # W2  (+ 2*b2) (bf16)
        ],
        out_specs=row(CODE_SIZE),
        compiler_params=pltpu.CompilerParams(
            dimension_semantics=("parallel",)),    # shard the batch axis across TCs
    )(z, a_aug, w1z, w1a, w2p)


def init_params(key):
    """Deterministic init matching nn.Linear shapes (stored as [in, out])."""
    k1, k2, k3, k4 = jax.random.split(key, 4)
    lim1 = 1.0 / float(INPUT_SIZE) ** 0.5
    lim2 = 1.0 / float(HIDDEN_SIZE) ** 0.5
    w1 = jax.random.uniform(k1, (INPUT_SIZE, HIDDEN_SIZE), jnp.float32, -lim1, lim1)
    b1 = jax.random.uniform(k2, (HIDDEN_SIZE,), jnp.float32, -lim1, lim1)
    w2 = jax.random.uniform(k3, (HIDDEN_SIZE, CODE_SIZE), jnp.float32, -lim2, lim2)
    b2 = jax.random.uniform(k4, (CODE_SIZE,), jnp.float32, -lim2, lim2)
    return (w1, b1, w2, b2)


def _reference_matched(z, action, prepared_params):
    """Pure-JAX reference replicating the kernel's exact bf16/f32 recipe and bias folds."""
    w1z, w1a, w2p = prepared_params
    a_aug = _augment_action(action)
    h = (jnp.dot(z.astype(jnp.bfloat16), w1z, preferred_element_type=jnp.float32)
         + jnp.dot(a_aug, w1a, preferred_element_type=jnp.float32))
    h = 0.5 * jnp.tanh(0.5 * h) + 0.5
    d = jnp.tanh(jnp.dot(h.astype(jnp.bfloat16), w2p, preferred_element_type=jnp.float32))
    zp = z + d
    zp = jnp.where(zp < 1.0, zp, 1.0)
    zp = jnp.where(zp >= 0.0, zp, 0.0)
    return zp


def _reference_f32(z, action, params):
    """Full-precision f32 reference matching the PyTorch module."""
    w1, b1, w2, b2 = params
    cat = jnp.concatenate([z, action.astype(jnp.float32)], axis=-1)
    h = jax.nn.sigmoid(jnp.dot(cat, w1, precision=jax.lax.Precision.HIGHEST) + b1)
    d = jnp.tanh(jnp.dot(h, w2, precision=jax.lax.Precision.HIGHEST) + b2)
    zp = z + d
    zp = jnp.where(zp < 1.0, zp, 1.0)
    zp = jnp.where(zp >= 0.0, zp, 0.0)
    return zp


if __name__ == "__main__":
    key = jax.random.PRNGKey(0)
    kp, kz1, ka1, kz2, ka2 = jax.random.split(key, 5)

    params = init_params(kp)
    prepared = prepare_params(params)

    def run_case(kz, ka, B):
        z = jax.random.uniform(kz, (B, CODE_SIZE), jnp.float32)            # codes in [0,1)
        action_idx = jax.random.randint(ka, (B,), 0, ACTION_SIZE)
        action = jax.nn.one_hot(action_idx, ACTION_SIZE, dtype=jnp.int32)  # (B, 4) ints

        out = jax.block_until_ready(transition_delta_forward(z, action, prepared))
        assert out.shape == (B, CODE_SIZE)
        assert out.dtype == jnp.float32

        ref_m = _reference_matched(z, action, prepared)
        ref_f = _reference_f32(z, action, params)
        assert jnp.allclose(out, ref_m, atol=3e-4, rtol=3e-4), \
            f"B={B}: mismatch vs bf16-matched reference"
        assert jnp.allclose(out, ref_f, atol=2e-2, rtol=2e-2), \
            f"B={B}: mismatch vs f32 reference"

    run_case(kz1, ka1, B=8)     # tiny single-block case
    run_case(kz2, ka2, B=200)   # multi-step grid + non-divisible (partial) last block

    print("KERNEL_OK")
</pallas_src>

<mosaic_0001>
module attributes {stable_mosaic.version = 11 : i64} {
  func.func @_transition_delta_kernel(%arg0: i32, %arg1: memref<8x100xf32, #tpu.memory_space<vmem>>, %arg2: memref<8x8xbf16, #tpu.memory_space<vmem>>, %arg3: memref<100x256xbf16, #tpu.memory_space<vmem>>, %arg4: memref<8x256xbf16, #tpu.memory_space<vmem>>, %arg5: memref<256x100xbf16, #tpu.memory_space<vmem>>, %arg6: memref<8x100xf32, #tpu.memory_space<vmem>>) attributes {dimension_semantics = [#tpu.dimension_semantics<parallel>], iteration_bounds = array<i64: 1>, scalar_prefetch = 0 : i64, scratch_operands = 0 : i64, tpu.core_type = #tpu.core_type<tc>, window_params = [{transform_indices = @transform_0, window_bounds = array<i64: 8, 100>}, {transform_indices = @transform_1, window_bounds = array<i64: 8, 8>}, {pipeline_mode = #tpu.pipeline_mode<synchronous>, transform_indices = @transform_2, window_bounds = array<i64: 100, 256>}, {pipeline_mode = #tpu.pipeline_mode<synchronous>, transform_indices = @transform_3, window_bounds = array<i64: 8, 256>}, {pipeline_mode = #tpu.pipeline_mode<synchronous>, transform_indices = @transform_4, window_bounds = array<i64: 256, 100>}, {transform_indices = @transform_5, window_bounds = array<i64: 8, 100>}]} {
    %c0 = arith.constant 0 : index
    %c0_0 = arith.constant 0 : index
    %0 = vector.load %arg1[%c0, %c0_0] : memref<8x100xf32, #tpu.memory_space<vmem>>, vector<8x100xf32>
    %1 = arith.truncf %0 : vector<8x100xf32> to vector<8x100xbf16>
    %c0_1 = arith.constant 0 : index
    %c0_2 = arith.constant 0 : index
    %2 = vector.load %arg3[%c0_1, %c0_2] : memref<100x256xbf16, #tpu.memory_space<vmem>>, vector<100x256xbf16>
    %cst = arith.constant dense<0.000000e+00> : vector<8x256xf32>
    %3 = tpu.matmul %1, %2, %cst {dimension_numbers = #tpu.dot_dimension_numbers<[1], [0], [0], [1], [0, 0, 1, 1], [], []>} : vector<8x100xbf16>, vector<100x256xbf16>, vector<8x256xf32> -> vector<8x256xf32>
    %c0_3 = arith.constant 0 : index
    %c0_4 = arith.constant 0 : index
    %4 = vector.load %arg2[%c0_3, %c0_4] : memref<8x8xbf16, #tpu.memory_space<vmem>>, vector<8x8xbf16>
    %c0_5 = arith.constant 0 : index
    %c0_6 = arith.constant 0 : index
    %5 = vector.load %arg4[%c0_5, %c0_6] : memref<8x256xbf16, #tpu.memory_space<vmem>>, vector<8x256xbf16>
    %cst_7 = arith.constant dense<0.000000e+00> : vector<8x256xf32>
    %6 = tpu.matmul %4, %5, %cst_7 {dimension_numbers = #tpu.dot_dimension_numbers<[1], [0], [0], [1], [0, 0, 1, 1], [], []>} : vector<8x8xbf16>, vector<8x256xbf16>, vector<8x256xf32> -> vector<8x256xf32>
    %7 = arith.addf %3, %6 : vector<8x256xf32>
    %cst_8 = arith.constant 5.000000e-01 : f32
    %8 = vector.broadcast %cst_8 : f32 to vector<8x256xf32>
    %9 = arith.mulf %8, %7 : vector<8x256xf32>
    %10 = math.tanh %9 : vector<8x256xf32>
    %cst_9 = arith.constant 5.000000e-01 : f32
    %11 = vector.broadcast %cst_9 : f32 to vector<8x256xf32>
    %12 = arith.mulf %11, %10 : vector<8x256xf32>
    %cst_10 = arith.constant 5.000000e-01 : f32
    %13 = vector.broadcast %cst_10 : f32 to vector<8x256xf32>
    %14 = arith.addf %12, %13 : vector<8x256xf32>
    %15 = arith.truncf %14 : vector<8x256xf32> to vector<8x256xbf16>
    %c0_11 = arith.constant 0 : index
    %c0_12 = arith.constant 0 : index
    %16 = vector.load %arg5[%c0_11, %c0_12] : memref<256x100xbf16, #tpu.memory_space<vmem>>, vector<256x100xbf16>
    %cst_13 = arith.constant dense<0.000000e+00> : vector<8x100xf32>
    %17 = tpu.matmul %15, %16, %cst_13 {dimension_numbers = #tpu.dot_dimension_numbers<[1], [0], [0], [1], [0, 0, 1, 1], [], []>} : vector<8x256xbf16>, vector<256x100xbf16>, vector<8x100xf32> -> vector<8x100xf32>
    %18 = math.tanh %17 : vector<8x100xf32>
    %19 = arith.addf %0, %18 : vector<8x100xf32>
    %cst_14 = arith.constant 1.000000e+00 : f32
    %20 = vector.broadcast %cst_14 : f32 to vector<8x100xf32>
    %21 = arith.cmpf olt, %19, %20 : vector<8x100xf32>
    %cst_15 = arith.constant 1.000000e+00 : f32
    %22 = vector.broadcast %cst_15 : f32 to vector<8x100xf32>
    %23 = arith.select %21, %19, %22 : vector<8x100xi1>, vector<8x100xf32>
    %cst_16 = arith.constant 0.000000e+00 : f32
    %24 = vector.broadcast %cst_16 : f32 to vector<8x100xf32>
    %25 = arith.cmpf oge, %23, %24 : vector<8x100xf32>
    %cst_17 = arith.constant 0.000000e+00 : f32
    %26 = vector.broadcast %cst_17 : f32 to vector<8x100xf32>
    %27 = arith.select %25, %23, %26 : vector<8x100xi1>, vector<8x100xf32>
    %c0_18 = arith.constant 0 : index
    %c0_19 = arith.constant 0 : index
    %28 = vector.load %arg6[%c0_18, %c0_19] : memref<8x100xf32, #tpu.memory_space<vmem>>, vector<8x100xf32>
    tpu.vector_store %arg6[%c0_18, %c0_19], %27 {strides = array<i32>} : memref<8x100xf32, #tpu.memory_space<vmem>>, vector<8x100xf32>,
    return
  }
  func.func @transform_0(%arg0: i32) -> (i32, i32) {
    %c0_i32 = arith.constant 0 : i32
    %c0_i32_0 = arith.constant 0 : i32
    return %arg0, %c0_i32 : i32, i32
  }
  func.func @transform_1(%arg0: i32) -> (i32, i32) {
    %c0_i32 = arith.constant 0 : i32
    %c0_i32_0 = arith.constant 0 : i32
    return %arg0, %c0_i32 : i32, i32
  }
  func.func @transform_2(%arg0: i32) -> (i32, i32) {
    %c0_i32 = arith.constant 0 : i32
    %c0_i32_0 = arith.constant 0 : i32
    %c0_i32_1 = arith.constant 0 : i32
    return %c0_i32, %c0_i32_0 : i32, i32
  }
  func.func @transform_3(%arg0: i32) -> (i32, i32) {
    %c0_i32 = arith.constant 0 : i32
    %c0_i32_0 = arith.constant 0 : i32
    %c0_i32_1 = arith.constant 0 : i32
    return %c0_i32, %c0_i32_0 : i32, i32
  }
  func.func @transform_4(%arg0: i32) -> (i32, i32) {
    %c0_i32 = arith.constant 0 : i32
    %c0_i32_0 = arith.constant 0 : i32
    %c0_i32_1 = arith.constant 0 : i32
    return %c0_i32, %c0_i32_0 : i32, i32
  }
  func.func @transform_5(%arg0: i32) -> (i32, i32) {
    %c0_i32 = arith.constant 0 : i32
    %c0_i32_0 = arith.constant 0 : i32
    return %arg0, %c0_i32 : i32, i32
  }
}

</mosaic_0001>

<llo_original>
// kernel: tpu_custom_call.1
$region0: #{tpu_custom_call.1}
  #allocation0 [shape = 'u32[]', space=smem, size = 0x4, offset = 0x4, fixed_abs, tag = 'smem constant byte address 0x4 - core index']
  #allocation1 [shape = 'u32[144,128]{1,0:T(1,128)}', space=vmem, size = 0x12000, scoped, tag = 'internal scratch']
  %s0 = inlined_call_operand.vmem [shape: f32[8,100], index: 0, kind: input, shape index: {}]
  %s1 = inlined_call_operand.vmem [shape: bf16[8,8], index: 1, kind: input, shape index: {}]
  %s2 = inlined_call_operand.vmem [shape: bf16[100,256], index: 2, kind: input, shape index: {}]
  %s3 = inlined_call_operand.vmem [shape: bf16[8,256], index: 3, kind: input, shape index: {}]
  %s4 = inlined_call_operand.vmem [shape: bf16[256,100], index: 4, kind: input, shape index: {}]
  %s5 = inlined_call_operand.hbm [shape: f32[8,100], index: 5, kind: output, shape index: {}]
  %s6 = sld [smem:[#allocation0]]
  $region30: #{tpu_custom_call.1} parent=0
    _
  %s8 = ssub.s32 1, %s6
  %s9 = scalar_select 0, %s8, %s6
  $region1: #{tpu_custom_call.1} parent=0
    #allocation2 [shape = 'u8[4096]{0}', space=vmem, size = 0x1000, scoped, tag = 'output window, operand 0, single buffered']
    #allocation3 [shape = 's32[1]{0}', space=sflag, size = 0x4, scoped, tag = 'scoped memory for tpu_custom_call.1']
    %10 = vsyncpa [#allocation3], 0
    // Predicated region
    $region2: #{tpu_custom_call.1} parent=1 // pred_check
      _
    $region3: #{tpu_custom_call.1} parent=1 // pred_check_branch
      %12 = sbr.rel (0) target = $region5
    $region4: #{tpu_custom_call.1} parent=1 // pred_region
      _
    $region5: #{tpu_custom_call.1} parent=1 // pred_fallthru
      _
    // Predicated region
    $region6: #{tpu_custom_call.1} parent=1 // pred_check
      _
    $region7: #{tpu_custom_call.1} parent=1 // pred_check_branch
      %14 = sbr.rel (0) target = $region9
    $region8: #{tpu_custom_call.1} parent=1 // pred_region
      _
    $region9: #{tpu_custom_call.1} parent=1 // pred_fallthru
      _
    // Predicated region
    $region10: #{tpu_custom_call.1} parent=1 // pred_check
      _
    $region11: #{tpu_custom_call.1} parent=1 // pred_check_branch
      %16 = sbr.rel (0) target = $region13
    $region12: #{tpu_custom_call.1} parent=1 // pred_region
      _
    $region13: #{tpu_custom_call.1} parent=1 // pred_fallthru
      _
    // Predicated region
    $region14: #{tpu_custom_call.1} parent=1 // pred_check
      _
    $region15: #{tpu_custom_call.1} parent=1 // pred_check_branch
      %18 = sbr.rel (0) target = $region17
    $region16: #{tpu_custom_call.1} parent=1 // pred_region
      _
    $region17: #{tpu_custom_call.1} parent=1 // pred_fallthru
      _
    // Predicated region
    $region18: #{tpu_custom_call.1} parent=1 // pred_check
      _
    $region19: #{tpu_custom_call.1} parent=1 // pred_check_branch
      %20 = sbr.rel (0) target = $region21
    $region20: #{tpu_custom_call.1} parent=1 // pred_region
      _
    $region21: #{tpu_custom_call.1} parent=1 // pred_fallthru
      _
    %v22 = vld [vmem:[%s0] sm:$0xff]
    %v23 = vpack.c.bf16 %v22, %v22
    %v24 = vld [vmem:[%s2] sm:$0xff]
    %v25 = vld [vmem:[%s2 + $0x8] sm:$0xff]
    %v26 = vld [vmem:[%s2 + $0x10] sm:$0xff]
    %v27 = vld [vmem:[%s2 + $0x18] sm:$0xff]
    %v28 = vld [vmem:[%s2 + $0x20] sm:$0xff]
    %v29 = vld [vmem:[%s2 + $0x28] sm:$0xff]
    %v30 = vld [vmem:[%s2 + $0x30] sm:$0xff]
    %v31 = vld [vmem:[%s2 + $0x38] sm:$0xff]
    %v32 = vld [vmem:[%s2 + $0x40] sm:$0xff]
    %v33 = vld [vmem:[%s2 + $0x48] sm:$0xff]
    %v34 = vld [vmem:[%s2 + $0x50] sm:$0xff]
    %v35 = vld [vmem:[%s2 + $0x58] sm:$0xff]
    %v36 = vld [vmem:[%s2 + $0x60] sm:$0x33]
    %v37 = vld [vmem:[%s1] sm:$0xf]
    %v38 = vld [vmem:[%s3] sm:$0xff]
    %v40 = vunpack.c.l.b16 %v38
    %v41 = vunpack.c.h.b16 %v38
    %v42 = vpack.c.b16 %v40, %v40
    %v43 = vpack.c.b16 %v41, %v41
    %vm44 = vcmask 64512
    %v46 = vsel %vm44, %v37, 0
    %vm48 = vcmask 1043456
    %v50 = vsel %vm48, %v42, 0
    %v53 = vsel %vm48, %v43, 0
    %55 = vmatprep.subr.bf16.mxu0 0
    %56 = vmatpush1.bf16.msra.mxu0 0
    %57 = vmatprep.subr.bf16.mxu0 0
    %58 = vmatpush1.bf16.msra.mxu0 0
    %59 = vmatprep.subr.bf16.mxu0 0
    %60 = vmatpush1.bf16.msra.mxu0 0
    %61 = vmatprep.subr.bf16.mxu0 0
    %62 = vmatpush1.bf16.msra.mxu0 0
    %63 = vmatprep.subr.bf16.mxu0 0
    %64 = vmatpush1.bf16.msra.mxu0 0
    %65 = vmatprep.subr.bf16.mxu0 0
    %66 = vmatpush1.bf16.msra.mxu0 0
    %67 = vmatprep.subr.bf16.mxu0 0
    %68 = vmatpush1.bf16.msra.mxu0 0
    %69 = vmatprep.subr.bf16.mxu0 %v53
    %70 = vmatpush1.bf16.msra.mxu0 %v50
    %71 = vmatprep.subr.bf16.mxu0 0
    %72 = vmatpush2.bf16.msra.mxu0 0
    %73 = vmatprep.subr.bf16.mxu0 0
    %74 = vmatpush2.bf16.msra.mxu0 0
    %75 = vmatprep.subr.bf16.mxu0 0
    %76 = vmatpush2.bf16.msra.mxu0 0
    %77 = vmatprep.subr.bf16.mxu0 0
    %78 = vmatpush2.bf16.msra.mxu0 0
    %79 = vmatprep.subr.bf16.mxu0 0
    %80 = vmatpush2.bf16.msra.mxu0 0
    %81 = vmatprep.subr.bf16.mxu0 0
    %82 = vmatpush2.bf16.msra.mxu0 0
    %83 = vmatprep.subr.bf16.mxu0 0
    %84 = vmatpush2.bf16.msra.mxu0 0
    %85 = vmatprep.subr.bf16.mxu0 0
    %86 = vmatpush2.bf16.msra.mxu0 0
    %87 = vmatprep.mubr.bf16.mxu0 0
    %88 = vmatmul.mubr.bf16.gmra.mxu0 %v46
    %v89 = vpop.f32.mrf.mxu0
    %v90 = vadd.f32 0.0, %v89
    %v91 = vpop.f32.mrf.mxu0
    %v92 = vadd.f32 0.0, %v91
    %v93 = vpop.f32.mrf.mxu0
    %v94 = vpop.f32.mrf.mxu0
    %95 = vdwg.mxu0
    %v109 = vunpack.c.l.b16 %v24
    %v110 = vunpack.c.h.b16 %v24
    %v111 = vunpack.c.l.b16 %v25
    %v112 = vunpack.c.h.b16 %v25
    %v113 = vunpack.c.l.b16 %v26
    %v114 = vunpack.c.h.b16 %v26
    %v115 = vunpack.c.l.b16 %v27
    %v116 = vunpack.c.h.b16 %v27
    %v117 = vunpack.c.l.b16 %v28
    %v118 = vunpack.c.h.b16 %v28
    %v119 = vunpack.c.l.b16 %v29
    %v120 = vunpack.c.h.b16 %v29
    %v121 = vunpack.c.l.b16 %v30
    %v122 = vunpack.c.h.b16 %v30
    %v123 = vunpack.c.l.b16 %v31
    %v124 = vunpack.c.h.b16 %v31
    %v125 = vunpack.c.l.b16 %v32
    %v126 = vunpack.c.h.b16 %v32
    %v127 = vunpack.c.l.b16 %v33
    %v128 = vunpack.c.h.b16 %v33
    %v129 = vunpack.c.l.b16 %v34
    %v130 = vunpack.c.h.b16 %v34
    %v131 = vunpack.c.l.b16 %v35
    %v132 = vunpack.c.h.b16 %v35
    %v133 = vunpack.c.l.b16 %v36
    %v134 = vunpack.c.h.b16 %v36
    %v135 = vpack.c.b16 %v111, %v109
    %v136 = vpack.c.b16 %v112, %v110
    %v137 = vpack.c.b16 %v115, %v113
    %v138 = vpack.c.b16 %v116, %v114
    %v139 = vpack.c.b16 %v119, %v117
    %v140 = vpack.c.b16 %v120, %v118
    %v141 = vpack.c.b16 %v123, %v121
    %v142 = vpack.c.b16 %v124, %v122
    %v143 = vpack.c.b16 %v127, %v125
    %v144 = vpack.c.b16 %v128, %v126
    %v145 = vpack.c.b16 %v131, %v129
    %v146 = vpack.c.b16 %v132, %v130
    %v147 = vpack.c.b16 %v133, %v133
    %v148 = vpack.c.b16 %v134, %v134
    %vm161 = vcmask 818176
    %v163 = vsel %vm161, %v23, 0
    %vm165 = vcmask 1041408
    %v167 = vsel %vm165, %v147, 0
    %v170 = vsel %vm165, %v148, 0
    %172 = vmatprep.subr.bf16.mxu0 0
    %173 = vmatpush1.bf16.msra.mxu0 0
    %174 = vmatprep.subr.bf16.mxu0 %v170
    %175 = vmatpush1.bf16.msra.mxu0 %v167
    %176 = vmatprep.subr.bf16.mxu0 %v146
    %177 = vmatpush1.bf16.msra.mxu0 %v145
    %178 = vmatprep.subr.bf16.mxu0 %v144
    %179 = vmatpush1.bf16.msra.mxu0 %v143
    %180 = vmatprep.subr.bf16.mxu0 %v142
    %181 = vmatpush1.bf16.msra.mxu0 %v141
    %182 = vmatprep.subr.bf16.mxu0 %v140
    %183 = vmatpush1.bf16.msra.mxu0 %v139
    %184 = vmatprep.subr.bf16.mxu0 %v138
    %185 = vmatpush1.bf16.msra.mxu0 %v137
    %186 = vmatprep.subr.bf16.mxu0 %v136
    %187 = vmatpush1.bf16.msra.mxu0 %v135
    %188 = vmatprep.subr.bf16.mxu0 0
    %189 = vmatpush2.bf16.msra.mxu0 0
    %190 = vmatprep.subr.bf16.mxu0 0
    %191 = vmatpush2.bf16.msra.mxu0 0
    %192 = vmatprep.subr.bf16.mxu0 0
    %193 = vmatpush2.bf16.msra.mxu0 0
    %194 = vmatprep.subr.bf16.mxu0 0
    %195 = vmatpush2.bf16.msra.mxu0 0
    %196 = vmatprep.subr.bf16.mxu0 0
    %197 = vmatpush2.bf16.msra.mxu0 0
    %198 = vmatprep.subr.bf16.mxu0 0
    %199 = vmatpush2.bf16.msra.mxu0 0
    %200 = vmatprep.subr.bf16.mxu0 0
    %201 = vmatpush2.bf16.msra.mxu0 0
    %202 = vmatprep.subr.bf16.mxu0 0
    %203 = vmatpush2.bf16.msra.mxu0 0
    %204 = vmatprep.mubr.bf16.mxu0 0
    %205 = vmatmul.mubr.bf16.gmra.mxu0 %v163
    %v206 = vpop.f32.mrf.mxu0
    %v207 = vadd.f32 %v90, %v206
    %v208 = vpop.f32.mrf.mxu0
    %v209 = vadd.f32 %v92, %v208
    %v210 = vpop.f32.mrf.mxu0
    %v211 = vpop.f32.mrf.mxu0
    %212 = vdwg.mxu0
    %v213 = vmul.f32 %v207, 0.5
    %v214 = vmul.f32 %v209, 0.5
    %v215 = vtanh.pop %v213
    %v216 = vtanh.pop %v214
    %v217 = vmul.f32 %v215, 0.5
    %v218 = vmul.f32 %v216, 0.5
    %v219 = vadd.f32 %v217, 0.5
    %v220 = vadd.f32 %v218, 0.5
    %v221 = vpack.c.bf16 %v219, %v219
    %v222 = vpack.c.bf16 %v220, %v220
    %v223 = vld [vmem:[%s4] sm:$0xf]
    %v224 = vld [vmem:[%s4 + $0x4] sm:$0xf]
    %v225 = vld [vmem:[%s4 + $0x8] sm:$0xf]
    %v226 = vld [vmem:[%s4 + $0xc] sm:$0xf]
    %v227 = vld [vmem:[%s4 + $0x10] sm:$0xf]
    %v228 = vld [vmem:[%s4 + $0x14] sm:$0xf]
    %v229 = vld [vmem:[%s4 + $0x18] sm:$0xf]
    %v230 = vld [vmem:[%s4 + $0x1c] sm:$0xf]
    %v231 = vld [vmem:[%s4 + $0x20] sm:$0xf]
    %v232 = vld [vmem:[%s4 + $0x24] sm:$0xf]
    %v233 = vld [vmem:[%s4 + $0x28] sm:$0xf]
    %v234 = vld [vmem:[%s4 + $0x2c] sm:$0xf]
    %v235 = vld [vmem:[%s4 + $0x30] sm:$0xf]
    %v236 = vld [vmem:[%s4 + $0x34] sm:$0xf]
    %v237 = vld [vmem:[%s4 + $0x38] sm:$0xf]
    %v238 = vld [vmem:[%s4 + $0x3c] sm:$0xf]
    %v239 = vld [vmem:[%s4 + $0x40] sm:$0xf]
    %v240 = vld [vmem:[%s4 + $0x44] sm:$0xf]
    %v241 = vld [vmem:[%s4 + $0x48] sm:$0xf]
    %v242 = vld [vmem:[%s4 + $0x4c] sm:$0xf]
    %v243 = vld [vmem:[%s4 + $0x50] sm:$0xf]
    %v244 = vld [vmem:[%s4 + $0x54] sm:$0xf]
    %v245 = vld [vmem:[%s4 + $0x58] sm:$0xf]
    %v246 = vld [vmem:[%s4 + $0x5c] sm:$0xf]
    %v247 = vld [vmem:[%s4 + $0x60] sm:$0xf]
    %v248 = vld [vmem:[%s4 + $0x64] sm:$0xf]
    %v249 = vld [vmem:[%s4 + $0x68] sm:$0xf]
    %v250 = vld [vmem:[%s4 + $0x6c] sm:$0xf]
    %v251 = vld [vmem:[%s4 + $0x70] sm:$0xf]
    %v252 = vld [vmem:[%s4 + $0x74] sm:$0xf]
    %v253 = vld [vmem:[%s4 + $0x78] sm:$0xf]
    %v254 = vld [vmem:[%s4 + $0x7c] sm:$0xf]
    %v287 = vunpack.c.l.b16 %v223
    %v288 = vunpack.c.l.b16 %v224
    %v289 = vunpack.c.l.b16 %v225
    %v290 = vunpack.c.l.b16 %v226
    %v291 = vunpack.c.l.b16 %v227
    %v292 = vunpack.c.l.b16 %v228
    %v293 = vunpack.c.l.b16 %v229
    %v294 = vunpack.c.l.b16 %v230
    %v295 = vunpack.c.l.b16 %v231
    %v296 = vunpack.c.l.b16 %v232
    %v297 = vunpack.c.l.b16 %v233
    %v298 = vunpack.c.l.b16 %v234
    %v299 = vunpack.c.l.b16 %v235
    %v300 = vunpack.c.l.b16 %v236
    %v301 = vunpack.c.l.b16 %v237
    %v302 = vunpack.c.l.b16 %v238
    %v303 = vunpack.c.l.b16 %v239
    %v304 = vunpack.c.l.b16 %v240
    %v305 = vunpack.c.l.b16 %v241
    %v306 = vunpack.c.l.b16 %v242
    %v307 = vunpack.c.l.b16 %v243
    %v308 = vunpack.c.l.b16 %v244
    %v309 = vunpack.c.l.b16 %v245
    %v310 = vunpack.c.l.b16 %v246
    %v311 = vunpack.c.l.b16 %v247
    %v312 = vunpack.c.l.b16 %v248
    %v313 = vunpack.c.l.b16 %v249
    %v314 = vunpack.c.l.b16 %v250
    %v315 = vunpack.c.l.b16 %v251
    %v316 = vunpack.c.l.b16 %v252
    %v317 = vunpack.c.l.b16 %v253
    %v318 = vunpack.c.l.b16 %v254
    %v319 = vpack.c.b16 %v288, %v287
    %v320 = vpack.c.b16 %v290, %v289
    %v321 = vpack.c.b16 %v292, %v291
    %v322 = vpack.c.b16 %v294, %v293
    %v323 = vpack.c.b16 %v296, %v295
    %v324 = vpack.c.b16 %v298, %v297
    %v325 = vpack.c.b16 %v300, %v299
    %v326 = vpack.c.b16 %v302, %v301
    %v327 = vpack.c.b16 %v304, %v303
    %v328 = vpack.c.b16 %v306, %v305
    %v329 = vpack.c.b16 %v308, %v307
    %v330 = vpack.c.b16 %v310, %v309
    %v331 = vpack.c.b16 %v312, %v311
    %v332 = vpack.c.b16 %v314, %v313
    %v333 = vpack.c.b16 %v316, %v315
    %v334 = vpack.c.b16 %v318, %v317
    %351 = vmatprep.subr.bf16.mxu0 0
    %352 = vmatpush1.bf16.msra.mxu0 %v326
    %353 = vmatprep.subr.bf16.mxu0 0
    %354 = vmatpush1.bf16.msra.mxu0 %v325
    %355 = vmatprep.subr.bf16.mxu0 0
    %356 = vmatpush1.bf16.msra.mxu0 %v324
    %357 = vmatprep.subr.bf16.mxu0 0
    %358 = vmatpush1.bf16.msra.mxu0 %v323
    %359 = vmatprep.subr.bf16.mxu0 0
    %360 = vmatpush1.bf16.msra.mxu0 %v322
    %361 = vmatprep.subr.bf16.mxu0 0
    %362 = vmatpush1.bf16.msra.mxu0 %v321
    %363 = vmatprep.subr.bf16.mxu0 0
    %364 = vmatpush1.bf16.msra.mxu0 %v320
    %365 = vmatprep.subr.bf16.mxu0 0
    %366 = vmatpush1.bf16.msra.mxu0 %v319
    %367 = vmatprep.subr.bf16.mxu0 0
    %368 = vmatpush2.bf16.msra.mxu0 %v334
    %369 = vmatprep.subr.bf16.mxu0 0
    %370 = vmatpush2.bf16.msra.mxu0 %v333
    %371 = vmatprep.subr.bf16.mxu0 0
    %372 = vmatpush2.bf16.msra.mxu0 %v332
    %373 = vmatprep.subr.bf16.mxu0 0
    %374 = vmatpush2.bf16.msra.mxu0 %v331
    %375 = vmatprep.subr.bf16.mxu0 0
    %376 = vmatpush2.bf16.msra.mxu0 %v330
    %377 = vmatprep.subr.bf16.mxu0 0
    %378 = vmatpush2.bf16.msra.mxu0 %v329
    %379 = vmatprep.subr.bf16.mxu0 0
    %380 = vmatpush2.bf16.msra.mxu0 %v328
    %381 = vmatprep.subr.bf16.mxu0 0
    %382 = vmatpush2.bf16.msra.mxu0 %v327
    %383 = vmatprep.mubr.bf16.mxu0 %v222
    %384 = vmatmul.mubr.bf16.gmra.mxu0 %v221
    %v385 = vpop.f32.mrf.mxu0
    %v386 = vadd.f32 0.0, %v385
    %v387 = vpop.f32.mrf.mxu0
    %v388 = vpop.f32.mrf.mxu0
    %v389 = vpop.f32.mrf.mxu0
    %390 = vdwg.mxu0
    %v391 = vtanh.pop %v386
    %v392 = vadd.f32 %v22, %v391
    %vm393 = vcmp.lt.f32.partialorder %v392, 1.0
    %v394 = vsel %vm393, %v392, 1.0
    %vm395 = vcmp.ge.f32.partialorder %v394, 0.0
    %v396 = vsel %vm395, %v394, 0.0
    %397 = vst.msk [vmem:[#allocation2] sm:$0xff] %vm161, %v396
    // Predicated region
    $region22: #{tpu_custom_call.1} parent=1 // pred_check
      _
    $region23: #{tpu_custom_call.1} parent=1 // pred_check_branch
      %399 = sbr.rel (0) target = $region25
    $region24: #{tpu_custom_call.1} parent=1 // pred_region
      %s401 = ssub.s32 128, 128
      %402 = vsyncadd [#allocation3], %s401
      %s404 = sshll.u32 [#allocation2], 4
      %s405 = int_to_ptr.vmem [resolvable:$true] %s404
      %407 = dma.vmem_to_hbm [thread:$0]  %s405, 128, %s5, [#allocation3]
    $region25: #{tpu_custom_call.1} parent=1 // pred_fallthru
      _
    // Predicated region
    $region26: #{tpu_custom_call.1} parent=1 // pred_check
      _
    $region27: #{tpu_custom_call.1} parent=1 // pred_check_branch
      %409 = sbr.rel (0) target = $region29
    $region28: #{tpu_custom_call.1} parent=1 // pred_region
      %410 = dma.done [#allocation3], 128
    $region29: #{tpu_custom_call.1} parent=1 // pred_fallthru
      _
    %411 = vsyncpa [#allocation3], 1

</llo_original>
